<compile_context>
chip_gen: v5e
topology: v5e:2x2
jax: 0.10.0
libtpu: 0.0.40
codegen_flags: <defaults>
</compile_context>

<pallas_src>
import jax
import jax.numpy as jnp
from jax.experimental import pallas as pl
from jax.experimental.pallas import tpu as pltpu

LANE = 128


def _round_up(x, m):
    return (x + m - 1) // m * m


def _mlp_kernel(x_ref, w1_ref, b1_ref, w2_ref, b2_ref, w3_ref, b3_ref, o_ref):
    # x tile: (TB, in) bf16; weights bf16 (lane-padded to 128); biases f32 (1, 128k).
    x = x_ref[...]

    # Layer 1: Linear(in -> hid_p) + ReLU  (bf16 MXU operands, f32 accumulate)
    h1 = jnp.dot(x, w1_ref[...], preferred_element_type=jnp.float32) + b1_ref[...]
    h1 = jnp.maximum(h1, 0.0).astype(jnp.bfloat16)

    # Layer 2: Linear(hid_p -> hid_p) + ReLU
    h2 = jnp.dot(h1, w2_ref[...], preferred_element_type=jnp.float32) + b2_ref[...]
    h2 = jnp.maximum(h2, 0.0).astype(jnp.bfloat16)

    # Layer 3: Linear(hid_p -> out_p) + ReLU (the original module ends with nn.ReLU()).
    out = jnp.dot(h2, w3_ref[...], preferred_element_type=jnp.float32) + b3_ref[...]
    o_ref[...] = jnp.maximum(out, 0.0).astype(o_ref.dtype)


def neural_net_regression(x, params, *, tb_max=512):
    """Forward pass of NeuralNetRegression.

    x: (B, input_size) float32
    params: dict with w1 (in,h), b1 (1,h), w2 (h,h), b2 (1,h), w3 (h,out), b3 (1,out)
            (weights stored transposed vs. PyTorch so the kernel computes x @ W + b)
    returns: (B, output_size) float32
    """
    w1, b1 = params["w1"], params["b1"]
    w2, b2 = params["w2"], params["b2"]
    w3, b3 = params["w3"], params["b3"]

    B, in_size = x.shape
    hid = w1.shape[1]
    out_size = w3.shape[1]

    # --- lane-pad hidden / output dims to 128 (zero pad is numerically inert) ---
    hid_p = _round_up(hid, LANE)
    out_p = _round_up(out_size, LANE)

    def pad2(a, rows, cols):
        return jnp.pad(a, ((0, rows - a.shape[0]), (0, cols - a.shape[1])))

    w1p = pad2(w1, in_size, hid_p).astype(jnp.bfloat16)
    w2p = pad2(w2, hid_p, hid_p).astype(jnp.bfloat16)
    w3p = pad2(w3, hid_p, out_p).astype(jnp.bfloat16)
    b1p = pad2(b1, 1, hid_p)        # biases stay f32 (bias add + ReLU on VPU in f32)
    b2p = pad2(b2, 1, hid_p)
    b3p = pad2(b3, 1, out_p)

    # --- batch tiling: TB multiple of 8, batch padded to a multiple of TB ---
    b_pad8 = _round_up(B, 8)
    tb = min(tb_max, b_pad8)
    b_pad = _round_up(B, tb)
    xp = jnp.pad(x, ((0, b_pad - B), (0, 0))).astype(jnp.bfloat16)
    n_tiles = b_pad // tb

    # Resident (un-tiled) weight/bias specs; batch-tiled x / out specs.
    res = lambda a: pl.BlockSpec(a.shape, lambda i: (0, 0))

    flops = 2 * b_pad * (in_size * hid_p + hid_p * hid_p + hid_p * out_p)
    bytes_accessed = (
        xp.size * xp.dtype.itemsize
        + sum(a.size * a.dtype.itemsize for a in (w1p, b1p, w2p, b2p, w3p, b3p))
        + b_pad * out_p * 4
    )

    out_padded = pl.pallas_call(
        _mlp_kernel,
        out_shape=jax.ShapeDtypeStruct((b_pad, out_p), jnp.float32),
        grid=(n_tiles,),
        in_specs=[
            pl.BlockSpec((tb, in_size), lambda i: (i, 0)),   # x tile
            res(w1p), res(b1p), res(w2p), res(b2p), res(w3p), res(b3p),
        ],
        out_specs=pl.BlockSpec((tb, out_p), lambda i: (i, 0)),
        compiler_params=pltpu.CompilerParams(
            dimension_semantics=("parallel",),
        ),
        cost_estimate=pl.CostEstimate(
            flops=flops, transcendentals=0, bytes_accessed=bytes_accessed),
    )(xp, w1p, b1p, w2p, b2p, w3p, b3p)

    return out_padded[:B, :out_size]


def init_params(key, input_size, hidden_size, output_size):
    """Deterministic synthetic parameters (nn.Linear shapes, stored transposed)."""
    ks = jax.random.split(key, 6)
    scale = 0.1
    return {
        "w1": scale * jax.random.normal(ks[0], (input_size, hidden_size), jnp.float32),
        "b1": scale * jax.random.normal(ks[1], (1, hidden_size), jnp.float32),
        "w2": scale * jax.random.normal(ks[2], (hidden_size, hidden_size), jnp.float32),
        "b2": scale * jax.random.normal(ks[3], (1, hidden_size), jnp.float32),
        "w3": scale * jax.random.normal(ks[4], (hidden_size, output_size), jnp.float32),
        "b3": scale * jax.random.normal(ks[5], (1, output_size), jnp.float32),
    }


def _reference(x, p):
    # Same numerics as the kernel: bf16 MXU operands, f32 accumulate, f32 bias/ReLU.
    def lin_relu(a, w, b):
        y = jnp.dot(a.astype(jnp.bfloat16), w.astype(jnp.bfloat16),
                    preferred_element_type=jnp.float32) + b
        return jnp.maximum(y, 0.0)

    h1 = lin_relu(x, p["w1"], p["b1"])
    h2 = lin_relu(h1, p["w2"], p["b2"])
    return lin_relu(h2, p["w3"], p["b3"])


if __name__ == "__main__":
    input_size, hidden_size, output_size = 4, 32, 1
    batch = 8

    key = jax.random.PRNGKey(0)
    kx, kp = jax.random.split(key)
    x = jax.random.normal(kx, (batch, input_size), jnp.float32)
    params = init_params(kp, input_size, hidden_size, output_size)

    out = neural_net_regression(x, params)
    out = jax.block_until_ready(out)

    ref = _reference(x, params)
    assert out.shape == (batch, output_size)
    assert jnp.allclose(out, ref, atol=1e-2, rtol=1e-2), (out, ref)

    print("KERNEL_OK")
</pallas_src>

<mosaic_0001>
module attributes {stable_mosaic.version = 11 : i64} {
  func.func @_mlp_kernel(%arg0: i32, %arg1: memref<8x4xbf16, #tpu.memory_space<vmem>>, %arg2: memref<4x128xbf16, #tpu.memory_space<vmem>>, %arg3: memref<1x128xf32, #tpu.memory_space<vmem>>, %arg4: memref<128x128xbf16, #tpu.memory_space<vmem>>, %arg5: memref<1x128xf32, #tpu.memory_space<vmem>>, %arg6: memref<128x128xbf16, #tpu.memory_space<vmem>>, %arg7: memref<1x128xf32, #tpu.memory_space<vmem>>, %arg8: memref<8x128xf32, #tpu.memory_space<vmem>>) attributes {dimension_semantics = [#tpu.dimension_semantics<parallel>], iteration_bounds = array<i64: 1>, scalar_prefetch = 0 : i64, scratch_operands = 0 : i64, tpu.core_type = #tpu.core_type<tc>, window_params = [{transform_indices = @transform_0, window_bounds = array<i64: 8, 4>}, {pipeline_mode = #tpu.pipeline_mode<synchronous>, transform_indices = @transform_1, window_bounds = array<i64: 4, 128>}, {pipeline_mode = #tpu.pipeline_mode<synchronous>, transform_indices = @transform_2, window_bounds = array<i64: 1, 128>}, {pipeline_mode = #tpu.pipeline_mode<synchronous>, transform_indices = @transform_3, window_bounds = array<i64: 128, 128>}, {pipeline_mode = #tpu.pipeline_mode<synchronous>, transform_indices = @transform_4, window_bounds = array<i64: 1, 128>}, {pipeline_mode = #tpu.pipeline_mode<synchronous>, transform_indices = @transform_5, window_bounds = array<i64: 128, 128>}, {pipeline_mode = #tpu.pipeline_mode<synchronous>, transform_indices = @transform_6, window_bounds = array<i64: 1, 128>}, {transform_indices = @transform_7, window_bounds = array<i64: 8, 128>}]} {
    %c0 = arith.constant 0 : index
    %c0_0 = arith.constant 0 : index
    %0 = vector.load %arg1[%c0, %c0_0] : memref<8x4xbf16, #tpu.memory_space<vmem>>, vector<8x4xbf16>
    %c0_1 = arith.constant 0 : index
    %c0_2 = arith.constant 0 : index
    %1 = vector.load %arg2[%c0_1, %c0_2] : memref<4x128xbf16, #tpu.memory_space<vmem>>, vector<4x128xbf16>
    %cst = arith.constant dense<0.000000e+00> : vector<8x128xf32>
    %2 = tpu.matmul %0, %1, %cst {dimension_numbers = #tpu.dot_dimension_numbers<[1], [0], [0], [1], [0, 0, 1, 1], [], []>} : vector<8x4xbf16>, vector<4x128xbf16>, vector<8x128xf32> -> vector<8x128xf32>
    %c0_3 = arith.constant 0 : index
    %c0_4 = arith.constant 0 : index
    %3 = vector.load %arg3[%c0_3, %c0_4] : memref<1x128xf32, #tpu.memory_space<vmem>>, vector<1x128xf32>
    %4 = vector.broadcast %3 : vector<1x128xf32> to vector<8x128xf32>
    %5 = arith.addf %2, %4 : vector<8x128xf32>
    %cst_5 = arith.constant 0.000000e+00 : f32
    %6 = vector.broadcast %cst_5 : f32 to vector<8x128xf32>
    %7 = arith.maximumf %5, %6 : vector<8x128xf32>
    %8 = arith.truncf %7 : vector<8x128xf32> to vector<8x128xbf16>
    %c0_6 = arith.constant 0 : index
    %c0_7 = arith.constant 0 : index
    %9 = vector.load %arg4[%c0_6, %c0_7] : memref<128x128xbf16, #tpu.memory_space<vmem>>, vector<128x128xbf16>
    %cst_8 = arith.constant dense<0.000000e+00> : vector<8x128xf32>
    %10 = tpu.matmul %8, %9, %cst_8 {dimension_numbers = #tpu.dot_dimension_numbers<[1], [0], [0], [1], [0, 0, 1, 1], [], []>} : vector<8x128xbf16>, vector<128x128xbf16>, vector<8x128xf32> -> vector<8x128xf32>
    %c0_9 = arith.constant 0 : index
    %c0_10 = arith.constant 0 : index
    %11 = vector.load %arg5[%c0_9, %c0_10] : memref<1x128xf32, #tpu.memory_space<vmem>>, vector<1x128xf32>
    %12 = vector.broadcast %11 : vector<1x128xf32> to vector<8x128xf32>
    %13 = arith.addf %10, %12 : vector<8x128xf32>
    %cst_11 = arith.constant 0.000000e+00 : f32
    %14 = vector.broadcast %cst_11 : f32 to vector<8x128xf32>
    %15 = arith.maximumf %13, %14 : vector<8x128xf32>
    %16 = arith.truncf %15 : vector<8x128xf32> to vector<8x128xbf16>
    %c0_12 = arith.constant 0 : index
    %c0_13 = arith.constant 0 : index
    %17 = vector.load %arg6[%c0_12, %c0_13] : memref<128x128xbf16, #tpu.memory_space<vmem>>, vector<128x128xbf16>
    %cst_14 = arith.constant dense<0.000000e+00> : vector<8x128xf32>
    %18 = tpu.matmul %16, %17, %cst_14 {dimension_numbers = #tpu.dot_dimension_numbers<[1], [0], [0], [1], [0, 0, 1, 1], [], []>} : vector<8x128xbf16>, vector<128x128xbf16>, vector<8x128xf32> -> vector<8x128xf32>
    %c0_15 = arith.constant 0 : index
    %c0_16 = arith.constant 0 : index
    %19 = vector.load %arg7[%c0_15, %c0_16] : memref<1x128xf32, #tpu.memory_space<vmem>>, vector<1x128xf32>
    %20 = vector.broadcast %19 : vector<1x128xf32> to vector<8x128xf32>
    %21 = arith.addf %18, %20 : vector<8x128xf32>
    %cst_17 = arith.constant 0.000000e+00 : f32
    %22 = vector.broadcast %cst_17 : f32 to vector<8x128xf32>
    %23 = arith.maximumf %21, %22 : vector<8x128xf32>
    %c0_18 = arith.constant 0 : index
    %c0_19 = arith.constant 0 : index
    %24 = vector.load %arg8[%c0_18, %c0_19] : memref<8x128xf32, #tpu.memory_space<vmem>>, vector<8x128xf32>
    tpu.vector_store %arg8[%c0_18, %c0_19], %23 {strides = array<i32>} : memref<8x128xf32, #tpu.memory_space<vmem>>, vector<8x128xf32>,
    return
  }
  func.func @transform_0(%arg0: i32) -> (i32, i32) {
    %c0_i32 = arith.constant 0 : i32
    %c0_i32_0 = arith.constant 0 : i32
    return %arg0, %c0_i32 : i32, i32
  }
  func.func @transform_1(%arg0: i32) -> (i32, i32) {
    %c0_i32 = arith.constant 0 : i32
    %c0_i32_0 = arith.constant 0 : i32
    %c0_i32_1 = arith.constant 0 : i32
    return %c0_i32, %c0_i32_0 : i32, i32
  }
  func.func @transform_2(%arg0: i32) -> (i32, i32) {
    %c0_i32 = arith.constant 0 : i32
    %c0_i32_0 = arith.constant 0 : i32
    %c0_i32_1 = arith.constant 0 : i32
    return %c0_i32, %c0_i32_0 : i32, i32
  }
  func.func @transform_3(%arg0: i32) -> (i32, i32) {
    %c0_i32 = arith.constant 0 : i32
    %c0_i32_0 = arith.constant 0 : i32
    %c0_i32_1 = arith.constant 0 : i32
    return %c0_i32, %c0_i32_0 : i32, i32
  }
  func.func @transform_4(%arg0: i32) -> (i32, i32) {
    %c0_i32 = arith.constant 0 : i32
    %c0_i32_0 = arith.constant 0 : i32
    %c0_i32_1 = arith.constant 0 : i32
    return %c0_i32, %c0_i32_0 : i32, i32
  }
  func.func @transform_5(%arg0: i32) -> (i32, i32) {
    %c0_i32 = arith.constant 0 : i32
    %c0_i32_0 = arith.constant 0 : i32
    %c0_i32_1 = arith.constant 0 : i32
    return %c0_i32, %c0_i32_0 : i32, i32
  }
  func.func @transform_6(%arg0: i32) -> (i32, i32) {
    %c0_i32 = arith.constant 0 : i32
    %c0_i32_0 = arith.constant 0 : i32
    %c0_i32_1 = arith.constant 0 : i32
    return %c0_i32, %c0_i32_0 : i32, i32
  }
  func.func @transform_7(%arg0: i32) -> (i32, i32) {
    %c0_i32 = arith.constant 0 : i32
    %c0_i32_0 = arith.constant 0 : i32
    return %arg0, %c0_i32 : i32, i32
  }
}

</mosaic_0001>

<llo_original>
// kernel: tpu_custom_call.1
$region0: #{tpu_custom_call.1}
  #allocation0 [shape = 'u32[]', space=smem, size = 0x4, offset = 0x4, fixed_abs, tag = 'smem constant byte address 0x4 - core index']
  #allocation1 [shape = 'u32[72,128]{1,0:T(1,128)}', space=vmem, size = 0x9000, scoped, tag = 'internal scratch']
  %s0 = inlined_call_operand.vmem [shape: bf16[8,4], index: 0, kind: input, shape index: {}]
  %s1 = inlined_call_operand.vmem [shape: bf16[4,128], index: 1, kind: input, shape index: {}]
  %s2 = inlined_call_operand.vmem [shape: f32[1,128], index: 2, kind: input, shape index: {}]
  %s3 = inlined_call_operand.hbm [shape: bf16[128,128], index: 3, kind: input, shape index: {}]
  %s4 = inlined_call_operand.vmem [shape: f32[1,128], index: 4, kind: input, shape index: {}]
  %s5 = inlined_call_operand.hbm [shape: bf16[128,128], index: 5, kind: input, shape index: {}]
  %s6 = inlined_call_operand.vmem [shape: f32[1,128], index: 6, kind: input, shape index: {}]
  %s7 = inlined_call_operand.hbm [shape: f32[8,128], index: 7, kind: output, shape index: {}]
  %s8 = sld [smem:[#allocation0]]
  $region46: #{tpu_custom_call.1} parent=0
    _
  %s10 = ssub.s32 1, %s8
  %s11 = scalar_select 0, %s10, %s8
  $region1: #{tpu_custom_call.1} parent=0
    #allocation2 [shape = 'u8[32768]{0}', space=vmem, size = 0x8000, scoped, tag = 'input window, operand 3, single buffered']
    #allocation3 [shape = 's32[1]{0}', space=sflag, size = 0x4, scoped, tag = 'scoped memory for tpu_custom_call.1']
    #allocation4 [shape = 's32[1]{0}', space=sflag, size = 0x4, scoped, tag = 'scoped memory for tpu_custom_call.1']
    #allocation5 [shape = 'u8[32768]{0}', space=vmem, size = 0x8000, scoped, tag = 'input window, operand 5, single buffered']
    #allocation6 [shape = 's32[1]{0}', space=sflag, size = 0x4, scoped, tag = 'scoped memory for tpu_custom_call.1']
    #allocation7 [shape = 'u8[4096]{0}', space=vmem, size = 0x1000, scoped, tag = 'output window, operand 0, single buffered']
    %12 = vsyncpa [#allocation3], 0
    %13 = vsyncpa [#allocation6], 0
    %14 = vsyncpa [#allocation4], 0
    // Predicated region
    $region2: #{tpu_custom_call.1} parent=1 // pred_check
      _
    $region3: #{tpu_custom_call.1} parent=1 // pred_check_branch
      %16 = sbr.rel (0) target = $region5
    $region4: #{tpu_custom_call.1} parent=1 // pred_region
      _
    $region5: #{tpu_custom_call.1} parent=1 // pred_fallthru
      _
    // Predicated region
    $region6: #{tpu_custom_call.1} parent=1 // pred_check
      _
    $region7: #{tpu_custom_call.1} parent=1 // pred_check_branch
      %18 = sbr.rel (0) target = $region9
    $region8: #{tpu_custom_call.1} parent=1 // pred_region
      _
    $region9: #{tpu_custom_call.1} parent=1 // pred_fallthru
      _
    // Predicated region
    $region10: #{tpu_custom_call.1} parent=1 // pred_check
      _
    $region11: #{tpu_custom_call.1} parent=1 // pred_check_branch
      %20 = sbr.rel (0) target = $region13
    $region12: #{tpu_custom_call.1} parent=1 // pred_region
      _
    $region13: #{tpu_custom_call.1} parent=1 // pred_fallthru
      _
    // Predicated region
    $region14: #{tpu_custom_call.1} parent=1 // pred_check
      _
    $region15: #{tpu_custom_call.1} parent=1 // pred_check_branch
      %22 = sbr.rel (0) target = $region17
    $region16: #{tpu_custom_call.1} parent=1 // pred_region
      %24 = vsyncadd [#allocation3], 0
      %s25 = sshll.u32 %s3, 4
      %s26 = int_to_ptr.hbm [resolvable:$true] %s25
      %s27 = sshll.u32 [#allocation2], 4
      %s28 = int_to_ptr.vmem [resolvable:$true] %s27
      %33 = dma.hbm_to_vmem [thread:$0]  %s26, 1024, %s28, [#allocation3], 64, 64, 4
    $region17: #{tpu_custom_call.1} parent=1 // pred_fallthru
      _
    // Predicated region
    $region18: #{tpu_custom_call.1} parent=1 // pred_check
      _
    $region19: #{tpu_custom_call.1} parent=1 // pred_check_branch
      %35 = sbr.rel (0) target = $region21
    $region20: #{tpu_custom_call.1} parent=1 // pred_region
      _
    $region21: #{tpu_custom_call.1} parent=1 // pred_fallthru
      _
    // Predicated region
    $region22: #{tpu_custom_call.1} parent=1 // pred_check
      _
    $region23: #{tpu_custom_call.1} parent=1 // pred_check_branch
      %37 = sbr.rel (0) target = $region25
    $region24: #{tpu_custom_call.1} parent=1 // pred_region
      %39 = vsyncadd [#allocation6], 0
      %s40 = sshll.u32 %s5, 4
      %s41 = int_to_ptr.hbm [resolvable:$true] %s40
      %s42 = sshll.u32 [#allocation5], 4
      %s43 = int_to_ptr.vmem [resolvable:$true] %s42
      %48 = dma.hbm_to_vmem [thread:$0]  %s41, 1024, %s43, [#allocation6], 64, 64, 4
    $region25: #{tpu_custom_call.1} parent=1 // pred_fallthru
      _
    // Predicated region
    $region26: #{tpu_custom_call.1} parent=1 // pred_check
      _
    $region27: #{tpu_custom_call.1} parent=1 // pred_check_branch
      %50 = sbr.rel (0) target = $region29
    $region28: #{tpu_custom_call.1} parent=1 // pred_region
      _
    $region29: #{tpu_custom_call.1} parent=1 // pred_fallthru
      _
    // Predicated region
    $region30: #{tpu_custom_call.1} parent=1 // pred_check
      _
    $region31: #{tpu_custom_call.1} parent=1 // pred_check_branch
      %52 = sbr.rel (0) target = $region33
    $region32: #{tpu_custom_call.1} parent=1 // pred_region
      %54 = dma.done [#allocation3], 1024
    $region33: #{tpu_custom_call.1} parent=1 // pred_fallthru
      _
    // Predicated region
    $region34: #{tpu_custom_call.1} parent=1 // pred_check
      _
    $region35: #{tpu_custom_call.1} parent=1 // pred_check_branch
      %56 = sbr.rel (0) target = $region37
    $region36: #{tpu_custom_call.1} parent=1 // pred_region
      %58 = dma.done [#allocation6], 1024
    $region37: #{tpu_custom_call.1} parent=1 // pred_fallthru
      _
    %v60 = vld [vmem:[%s0] sm:$0xf]
    %v61 = vld [vmem:[%s1] sm:$0x3]
    %v62 = vld [vmem:[%s2] sm:$0x1]
    %v64 = vperm.slane %v62, 0
    %vm66 = vcmask 31744
    %v68 = vsel %vm66, %v60, 0
    %vm70 = vcmask 1041408
    %v72 = vsel %vm70, %v61, 0
    %74 = vmatpush.bf16.msra.mxu0 0
    %75 = vmatpush.bf16.msra.mxu0 0
    %76 = vmatpush.bf16.msra.mxu0 0
    %77 = vmatpush.bf16.msra.mxu0 0
    %78 = vmatpush.bf16.msra.mxu0 0
    %79 = vmatpush.bf16.msra.mxu0 0
    %80 = vmatpush.bf16.msra.mxu0 0
    %81 = vmatpush.bf16.msra.mxu0 %v72
    %82 = vmatmul.bf16.gmra.mxu0 %v68
    %v83 = vpop.f32.mrf.mxu0
    %v84 = vadd.f32 %v64, %v83
    %v85 = vpop.f32.mrf.mxu0
    %86 = vdwg.mxu0
    %v87 = vmax.f32 %v84, 0.0
    %v88 = vpack.c.bf16 %v87, %v87
    %v89 = vld [vmem:[#allocation2] sm:$0xf]
    %v90 = vld [vmem:[#allocation2 + $0x4] sm:$0xf]
    %v91 = vld [vmem:[#allocation2 + $0x8] sm:$0xf]
    %v92 = vld [vmem:[#allocation2 + $0xc] sm:$0xf]
    %v93 = vld [vmem:[#allocation2 + $0x10] sm:$0xf]
    %v94 = vld [vmem:[#allocation2 + $0x14] sm:$0xf]
    %v95 = vld [vmem:[#allocation2 + $0x18] sm:$0xf]
    %v96 = vld [vmem:[#allocation2 + $0x1c] sm:$0xf]
    %v97 = vld [vmem:[#allocation2 + $0x20] sm:$0xf]
    %v98 = vld [vmem:[#allocation2 + $0x24] sm:$0xf]
    %v99 = vld [vmem:[#allocation2 + $0x28] sm:$0xf]
    %v100 = vld [vmem:[#allocation2 + $0x2c] sm:$0xf]
    %v101 = vld [vmem:[#allocation2 + $0x30] sm:$0xf]
    %v102 = vld [vmem:[#allocation2 + $0x34] sm:$0xf]
    %v103 = vld [vmem:[#allocation2 + $0x38] sm:$0xf]
    %v104 = vld [vmem:[#allocation2 + $0x3c] sm:$0xf]
    %v105 = vld [vmem:[%s4] sm:$0x1]
    %v107 = vperm.slane %v105, 0
    %v125 = vunpack.c.l.b16 %v89
    %v126 = vunpack.c.l.b16 %v90
    %v127 = vunpack.c.l.b16 %v91
    %v128 = vunpack.c.l.b16 %v92
    %v129 = vunpack.c.l.b16 %v93
    %v130 = vunpack.c.l.b16 %v94
    %v131 = vunpack.c.l.b16 %v95
    %v132 = vunpack.c.l.b16 %v96
    %v133 = vunpack.c.l.b16 %v97
    %v134 = vunpack.c.l.b16 %v98
    %v135 = vunpack.c.l.b16 %v99
    %v136 = vunpack.c.l.b16 %v100
    %v137 = vunpack.c.l.b16 %v101
    %v138 = vunpack.c.l.b16 %v102
    %v139 = vunpack.c.l.b16 %v103
    %v140 = vunpack.c.l.b16 %v104
    %v141 = vpack.c.b16 %v126, %v125
    %v142 = vpack.c.b16 %v128, %v127
    %v143 = vpack.c.b16 %v130, %v129
    %v144 = vpack.c.b16 %v132, %v131
    %v145 = vpack.c.b16 %v134, %v133
    %v146 = vpack.c.b16 %v136, %v135
    %v147 = vpack.c.b16 %v138, %v137
    %v148 = vpack.c.b16 %v140, %v139
    %157 = vmatpush.bf16.msra.mxu0 %v148
    %158 = vmatpush.bf16.msra.mxu0 %v147
    %159 = vmatpush.bf16.msra.mxu0 %v146
    %160 = vmatpush.bf16.msra.mxu0 %v145
    %161 = vmatpush.bf16.msra.mxu0 %v144
    %162 = vmatpush.bf16.msra.mxu0 %v143
    %163 = vmatpush.bf16.msra.mxu0 %v142
    %164 = vmatpush.bf16.msra.mxu0 %v141
    %165 = vmatmul.bf16.gmra.mxu0 %v88
    %v166 = vpop.f32.mrf.mxu0
    %v167 = vadd.f32 %v107, %v166
    %v168 = vpop.f32.mrf.mxu0
    %169 = vdwg.mxu0
    %v170 = vmax.f32 %v167, 0.0
    %v171 = vpack.c.bf16 %v170, %v170
    %v172 = vld [vmem:[#allocation5] sm:$0xf]
    %v173 = vld [vmem:[#allocation5 + $0x4] sm:$0xf]
    %v174 = vld [vmem:[#allocation5 + $0x8] sm:$0xf]
    %v175 = vld [vmem:[#allocation5 + $0xc] sm:$0xf]
    %v176 = vld [vmem:[#allocation5 + $0x10] sm:$0xf]
    %v177 = vld [vmem:[#allocation5 + $0x14] sm:$0xf]
    %v178 = vld [vmem:[#allocation5 + $0x18] sm:$0xf]
    %v179 = vld [vmem:[#allocation5 + $0x1c] sm:$0xf]
    %v180 = vld [vmem:[#allocation5 + $0x20] sm:$0xf]
    %v181 = vld [vmem:[#allocation5 + $0x24] sm:$0xf]
    %v182 = vld [vmem:[#allocation5 + $0x28] sm:$0xf]
    %v183 = vld [vmem:[#allocation5 + $0x2c] sm:$0xf]
    %v184 = vld [vmem:[#allocation5 + $0x30] sm:$0xf]
    %v185 = vld [vmem:[#allocation5 + $0x34] sm:$0xf]
    %v186 = vld [vmem:[#allocation5 + $0x38] sm:$0xf]
    %v187 = vld [vmem:[#allocation5 + $0x3c] sm:$0xf]
    %v188 = vld [vmem:[%s6] sm:$0x1]
    %v190 = vperm.slane %v188, 0
    %v208 = vunpack.c.l.b16 %v172
    %v209 = vunpack.c.l.b16 %v173
    %v210 = vunpack.c.l.b16 %v174
    %v211 = vunpack.c.l.b16 %v175
    %v212 = vunpack.c.l.b16 %v176
    %v213 = vunpack.c.l.b16 %v177
    %v214 = vunpack.c.l.b16 %v178
    %v215 = vunpack.c.l.b16 %v179
    %v216 = vunpack.c.l.b16 %v180
    %v217 = vunpack.c.l.b16 %v181
    %v218 = vunpack.c.l.b16 %v182
    %v219 = vunpack.c.l.b16 %v183
    %v220 = vunpack.c.l.b16 %v184
    %v221 = vunpack.c.l.b16 %v185
    %v222 = vunpack.c.l.b16 %v186
    %v223 = vunpack.c.l.b16 %v187
    %v224 = vpack.c.b16 %v209, %v208
    %v225 = vpack.c.b16 %v211, %v210
    %v226 = vpack.c.b16 %v213, %v212
    %v227 = vpack.c.b16 %v215, %v214
    %v228 = vpack.c.b16 %v217, %v216
    %v229 = vpack.c.b16 %v219, %v218
    %v230 = vpack.c.b16 %v221, %v220
    %v231 = vpack.c.b16 %v223, %v222
    %240 = vmatpush.bf16.msra.mxu0 %v231
    %241 = vmatpush.bf16.msra.mxu0 %v230
    %242 = vmatpush.bf16.msra.mxu0 %v229
    %243 = vmatpush.bf16.msra.mxu0 %v228
    %244 = vmatpush.bf16.msra.mxu0 %v227
    %245 = vmatpush.bf16.msra.mxu0 %v226
    %246 = vmatpush.bf16.msra.mxu0 %v225
    %247 = vmatpush.bf16.msra.mxu0 %v224
    %248 = vmatmul.bf16.gmra.mxu0 %v171
    %v249 = vpop.f32.mrf.mxu0
    %v250 = vadd.f32 %v190, %v249
    %v251 = vpop.f32.mrf.mxu0
    %252 = vdwg.mxu0
    %v253 = vmax.f32 %v250, 0.0
    %254 = vst [vmem:[#allocation7] sm:$0xff] %v253
    // Predicated region
    $region38: #{tpu_custom_call.1} parent=1 // pred_check
      _
    $region39: #{tpu_custom_call.1} parent=1 // pred_check_branch
      %256 = sbr.rel (0) target = $region41
    $region40: #{tpu_custom_call.1} parent=1 // pred_region
      %258 = vsyncadd [#allocation4], 0
      %s260 = sshll.u32 [#allocation7], 4
      %s261 = int_to_ptr.vmem [resolvable:$true] %s260
      %s262 = sshll.u32 %s7, 4
      %s263 = int_to_ptr.hbm [resolvable:$true] %s262
      %265 = dma.vmem_to_hbm [thread:$0]  %s261, 128, %s263, [#allocation4]
    $region41: #{tpu_custom_call.1} parent=1 // pred_fallthru
      _
    // Predicated region
    $region42: #{tpu_custom_call.1} parent=1 // pred_check
      _
    $region43: #{tpu_custom_call.1} parent=1 // pred_check_branch
      %267 = sbr.rel (0) target = $region45
    $region44: #{tpu_custom_call.1} parent=1 // pred_region
      %269 = dma.done [#allocation4], 128
    $region45: #{tpu_custom_call.1} parent=1 // pred_fallthru
      _
    %270 = vsyncpa [#allocation3], 1
    %271 = vsyncpa [#allocation6], 1
    %272 = vsyncpa [#allocation4], 1

</llo_original>
